<compile_context>
chip_gen: v7x
topology: tpu7x:2x2x1
jax: 0.10.0
libtpu: 0.0.40
codegen_flags: <defaults>
</compile_context>

<pallas_src>
import jax
import jax.numpy as jnp
from jax.experimental import pallas as pl
from jax.experimental.pallas import tpu as pltpu

HIDDEN1 = 512
HIDDEN2 = 256
N_OUT = 2
OUT_PAD = 128  # lane-dense width for GEMM3 / bias add; only [:, :N_OUT] is stored


def _round_up(x, m):
    return (x + m - 1) // m * m


def goal_head_kernel(x_ref, w1_ref, b1_ref, w2_ref, b2_ref, w3_ref, b3_ref, o_ref):
    # x arrives f32 at real width F; cast to bf16 for the MXU (cheap VPU work,
    # hidden under the matmuls). All accumulation is f32; bias/ReLU math is f32.
    x = x_ref[...].astype(jnp.bfloat16)
    h1 = jnp.dot(x, w1_ref[...], preferred_element_type=jnp.float32)
    h1 = jnp.maximum(h1 + b1_ref[...], 0.0)

    h2 = jnp.dot(h1.astype(jnp.bfloat16), w2_ref[...], preferred_element_type=jnp.float32)
    h2 = jnp.maximum(h2 + b2_ref[...], 0.0)

    # GEMM3 is lane-dense (N = OUT_PAD = 128); only the 2 real columns are stored.
    logits = jnp.dot(h2.astype(jnp.bfloat16), w3_ref[...], preferred_element_type=jnp.float32)
    logits = logits + b3_ref[...]
    o_ref[...] = jax.nn.sigmoid(logits[:, :N_OUT])  # exp rides the EUP slot


def prepare_params(params):
    """One-time conversion of stored (in, out) params to kernel layout/dtypes.

    Do this outside the per-call hot path (e.g. at model load) so the pallas_call
    is the only op executed per inference.
    """
    return {
        "w1": params["w1"].astype(jnp.bfloat16),                   # (F, 512)
        "b1": params["b1"].astype(jnp.float32),                    # (1, 512)
        "w2": params["w2"].astype(jnp.bfloat16),                   # (512, 256)
        "b2": params["b2"].astype(jnp.float32),                    # (1, 256)
        "w3": jnp.pad(params["w3"], ((0, 0), (0, OUT_PAD - N_OUT))).astype(jnp.bfloat16),
        "b3": jnp.pad(params["b3"], ((0, 0), (0, OUT_PAD - N_OUT))).astype(jnp.float32),
    }


def goal_prediction_head(map_features, prepped, *, max_tb=1024):
    """map_features: (B, F) float32.  prepped: output of prepare_params()."""
    B, F = map_features.shape

    # Batch tile: 16-row aligned (bf16 sublane-pair friendly), capped at max_tb, and
    # split in two when possible so the "parallel" grid axis can shard across v7x's
    # two TensorCores (no-op on single-TC v5e/v6e).
    TB = max(16, min(max_tb, _round_up(-(-B // 2), 16)))
    B_pad = _round_up(B, TB)

    x = map_features
    if B_pad != B:
        x = jnp.pad(x, ((0, B_pad - B), (0, 0)))  # rows only; feature dim stays real F

    w1, b1 = prepped["w1"], prepped["b1"]
    w2, b2 = prepped["w2"], prepped["b2"]
    w3, b3 = prepped["w3"], prepped["b3"]

    grid = (B_pad // TB,)

    cost = pl.CostEstimate(
        flops=2 * B_pad * (F * HIDDEN1 + HIDDEN1 * HIDDEN2 + HIDDEN2 * OUT_PAD),
        transcendentals=B_pad * N_OUT,
        bytes_accessed=(
            B_pad * F * 4                      # x (f32, real width)
            + B_pad * N_OUT * 4                # narrow output
            + (w1.size + w2.size + w3.size) * 2
            + (b1.size + b2.size + b3.size) * 4
        ),
    )

    out = pl.pallas_call(
        goal_head_kernel,
        out_shape=jax.ShapeDtypeStruct((B_pad, N_OUT), jnp.float32),
        grid=grid,
        in_specs=[
            # x: tiled over batch, auto double-buffered. Last dim == full array dim -> legal.
            pl.BlockSpec((TB, F), lambda i: (i, 0)),
            # weights/biases: constant index_map -> resident in VMEM across grid steps.
            pl.BlockSpec((F, HIDDEN1), lambda i: (0, 0)),
            pl.BlockSpec((1, HIDDEN1), lambda i: (0, 0)),
            pl.BlockSpec((HIDDEN1, HIDDEN2), lambda i: (0, 0)),
            pl.BlockSpec((1, HIDDEN2), lambda i: (0, 0)),
            pl.BlockSpec((HIDDEN2, OUT_PAD), lambda i: (0, 0)),
            pl.BlockSpec((1, OUT_PAD), lambda i: (0, 0)),
        ],
        out_specs=pl.BlockSpec((TB, N_OUT), lambda i: (i, 0)),
        compiler_params=pltpu.CompilerParams(
            dimension_semantics=("parallel",),   # shard batch tiles across TCs on v7x
            vmem_limit_bytes=64 * 1024 * 1024,   # covers v5e's smaller scoped default at TB=1024
        ),
        cost_estimate=cost,
    )(x, w1, b1, w2, b2, w3, b3)

    return out[:B]


def init_params(n_map_features, key):
    """Deterministic synthetic parameters matching the PyTorch module's shapes."""
    ks = jax.random.split(key, 6)
    scale = 0.05
    return {
        "w1": scale * jax.random.normal(ks[0], (n_map_features, HIDDEN1), jnp.float32),
        "b1": scale * jax.random.normal(ks[1], (1, HIDDEN1), jnp.float32),
        "w2": scale * jax.random.normal(ks[2], (HIDDEN1, HIDDEN2), jnp.float32),
        "b2": scale * jax.random.normal(ks[3], (1, HIDDEN2), jnp.float32),
        "w3": scale * jax.random.normal(ks[4], (HIDDEN2, N_OUT), jnp.float32),
        "b3": scale * jax.random.normal(ks[5], (1, N_OUT), jnp.float32),
    }


def reference_forward(x, p):
    h1 = jnp.maximum(x @ p["w1"] + p["b1"], 0.0)
    h2 = jnp.maximum(h1 @ p["w2"] + p["b2"], 0.0)
    return jax.nn.sigmoid(h2 @ p["w3"] + p["b3"])


if __name__ == "__main__":
    key = jax.random.PRNGKey(0)
    k_x, k_p = jax.random.split(key)

    # Small deterministic example. At this size the kernel is launch-overhead bound by
    # construction; tiling pays off at production batch sizes (TB up to 1024 rows/step).
    B, n_map_features = 8, 32
    x = jax.random.normal(k_x, (B, n_map_features), jnp.float32)
    params = init_params(n_map_features, k_p)
    prepped = prepare_params(params)  # one-time; outside the per-call hot path

    out = goal_prediction_head(x, prepped)
    out = jax.block_until_ready(out)

    ref = reference_forward(x, params)
    assert out.shape == (B, N_OUT)
    assert bool(jnp.all(jnp.isfinite(out)))
    # Tolerance loosened vs. the pure-f32 reference because MXU inputs are bf16
    # (accumulation is still f32).
    assert jnp.allclose(out, ref, atol=2e-2, rtol=2e-2), "mismatch vs reference"

    print("KERNEL_OK")
</pallas_src>

<mosaic_0001>
module attributes {stable_mosaic.version = 11 : i64} {
  func.func @goal_head_kernel(%arg0: i32, %arg1: memref<16x32xf32, #tpu.memory_space<vmem>>, %arg2: memref<32x512xbf16, #tpu.memory_space<vmem>>, %arg3: memref<1x512xf32, #tpu.memory_space<vmem>>, %arg4: memref<512x256xbf16, #tpu.memory_space<vmem>>, %arg5: memref<1x256xf32, #tpu.memory_space<vmem>>, %arg6: memref<256x128xbf16, #tpu.memory_space<vmem>>, %arg7: memref<1x128xf32, #tpu.memory_space<vmem>>, %arg8: memref<16x2xf32, #tpu.memory_space<vmem>>) attributes {dimension_semantics = [#tpu.dimension_semantics<parallel>], iteration_bounds = array<i64: 1>, scalar_prefetch = 0 : i64, scratch_operands = 0 : i64, tpu.core_type = #tpu.core_type<tc>, window_params = [{transform_indices = @transform_0, window_bounds = array<i64: 16, 32>}, {pipeline_mode = #tpu.pipeline_mode<synchronous>, transform_indices = @transform_1, window_bounds = array<i64: 32, 512>}, {pipeline_mode = #tpu.pipeline_mode<synchronous>, transform_indices = @transform_2, window_bounds = array<i64: 1, 512>}, {pipeline_mode = #tpu.pipeline_mode<synchronous>, transform_indices = @transform_3, window_bounds = array<i64: 512, 256>}, {pipeline_mode = #tpu.pipeline_mode<synchronous>, transform_indices = @transform_4, window_bounds = array<i64: 1, 256>}, {pipeline_mode = #tpu.pipeline_mode<synchronous>, transform_indices = @transform_5, window_bounds = array<i64: 256, 128>}, {pipeline_mode = #tpu.pipeline_mode<synchronous>, transform_indices = @transform_6, window_bounds = array<i64: 1, 128>}, {transform_indices = @transform_7, window_bounds = array<i64: 16, 2>}]} {
    %c0 = arith.constant 0 : index
    %c0_0 = arith.constant 0 : index
    %0 = vector.load %arg1[%c0, %c0_0] : memref<16x32xf32, #tpu.memory_space<vmem>>, vector<16x32xf32>
    %1 = arith.truncf %0 : vector<16x32xf32> to vector<16x32xbf16>
    %c0_1 = arith.constant 0 : index
    %c0_2 = arith.constant 0 : index
    %2 = vector.load %arg2[%c0_1, %c0_2] : memref<32x512xbf16, #tpu.memory_space<vmem>>, vector<32x512xbf16>
    %cst = arith.constant dense<0.000000e+00> : vector<16x512xf32>
    %3 = tpu.matmul %1, %2, %cst {dimension_numbers = #tpu.dot_dimension_numbers<[1], [0], [0], [1], [0, 0, 1, 1], [], []>} : vector<16x32xbf16>, vector<32x512xbf16>, vector<16x512xf32> -> vector<16x512xf32>
    %c0_3 = arith.constant 0 : index
    %c0_4 = arith.constant 0 : index
    %4 = vector.load %arg3[%c0_3, %c0_4] : memref<1x512xf32, #tpu.memory_space<vmem>>, vector<1x512xf32>
    %5 = vector.broadcast %4 : vector<1x512xf32> to vector<16x512xf32>
    %6 = arith.addf %3, %5 : vector<16x512xf32>
    %cst_5 = arith.constant 0.000000e+00 : f32
    %7 = vector.broadcast %cst_5 : f32 to vector<16x512xf32>
    %8 = arith.maximumf %6, %7 : vector<16x512xf32>
    %9 = arith.truncf %8 : vector<16x512xf32> to vector<16x512xbf16>
    %c0_6 = arith.constant 0 : index
    %c0_7 = arith.constant 0 : index
    %10 = vector.load %arg4[%c0_6, %c0_7] : memref<512x256xbf16, #tpu.memory_space<vmem>>, vector<512x256xbf16>
    %cst_8 = arith.constant dense<0.000000e+00> : vector<16x256xf32>
    %11 = tpu.matmul %9, %10, %cst_8 {dimension_numbers = #tpu.dot_dimension_numbers<[1], [0], [0], [1], [0, 0, 1, 1], [], []>} : vector<16x512xbf16>, vector<512x256xbf16>, vector<16x256xf32> -> vector<16x256xf32>
    %c0_9 = arith.constant 0 : index
    %c0_10 = arith.constant 0 : index
    %12 = vector.load %arg5[%c0_9, %c0_10] : memref<1x256xf32, #tpu.memory_space<vmem>>, vector<1x256xf32>
    %13 = vector.broadcast %12 : vector<1x256xf32> to vector<16x256xf32>
    %14 = arith.addf %11, %13 : vector<16x256xf32>
    %cst_11 = arith.constant 0.000000e+00 : f32
    %15 = vector.broadcast %cst_11 : f32 to vector<16x256xf32>
    %16 = arith.maximumf %14, %15 : vector<16x256xf32>
    %17 = arith.truncf %16 : vector<16x256xf32> to vector<16x256xbf16>
    %c0_12 = arith.constant 0 : index
    %c0_13 = arith.constant 0 : index
    %18 = vector.load %arg6[%c0_12, %c0_13] : memref<256x128xbf16, #tpu.memory_space<vmem>>, vector<256x128xbf16>
    %cst_14 = arith.constant dense<0.000000e+00> : vector<16x128xf32>
    %19 = tpu.matmul %17, %18, %cst_14 {dimension_numbers = #tpu.dot_dimension_numbers<[1], [0], [0], [1], [0, 0, 1, 1], [], []>} : vector<16x256xbf16>, vector<256x128xbf16>, vector<16x128xf32> -> vector<16x128xf32>
    %c0_15 = arith.constant 0 : index
    %c0_16 = arith.constant 0 : index
    %20 = vector.load %arg7[%c0_15, %c0_16] : memref<1x128xf32, #tpu.memory_space<vmem>>, vector<1x128xf32>
    %21 = vector.broadcast %20 : vector<1x128xf32> to vector<16x128xf32>
    %22 = arith.addf %19, %21 : vector<16x128xf32>
    %23 = vector.extract_strided_slice %22 {offsets = [0, 0], sizes = [16, 2], strides = [1, 1]} : vector<16x128xf32> to vector<16x2xf32>
    %24 = arith.negf %23 : vector<16x2xf32>
    %25 = math.exp %24 : vector<16x2xf32>
    %cst_17 = arith.constant 1.000000e+00 : f32
    %26 = vector.broadcast %cst_17 : f32 to vector<16x2xf32>
    %27 = arith.addf %26, %25 : vector<16x2xf32>
    %28 = arith.divf %26, %27 : vector<16x2xf32>
    %c0_18 = arith.constant 0 : index
    %c0_19 = arith.constant 0 : index
    %29 = vector.load %arg8[%c0_18, %c0_19] : memref<16x2xf32, #tpu.memory_space<vmem>>, vector<16x2xf32>
    tpu.vector_store %arg8[%c0_18, %c0_19], %28 {strides = array<i32>} : memref<16x2xf32, #tpu.memory_space<vmem>>, vector<16x2xf32>,
    return
  }
  func.func @transform_0(%arg0: i32) -> (i32, i32) {
    %c0_i32 = arith.constant 0 : i32
    %c0_i32_0 = arith.constant 0 : i32
    return %arg0, %c0_i32 : i32, i32
  }
  func.func @transform_1(%arg0: i32) -> (i32, i32) {
    %c0_i32 = arith.constant 0 : i32
    %c0_i32_0 = arith.constant 0 : i32
    %c0_i32_1 = arith.constant 0 : i32
    return %c0_i32, %c0_i32_0 : i32, i32
  }
  func.func @transform_2(%arg0: i32) -> (i32, i32) {
    %c0_i32 = arith.constant 0 : i32
    %c0_i32_0 = arith.constant 0 : i32
    %c0_i32_1 = arith.constant 0 : i32
    return %c0_i32, %c0_i32_0 : i32, i32
  }
  func.func @transform_3(%arg0: i32) -> (i32, i32) {
    %c0_i32 = arith.constant 0 : i32
    %c0_i32_0 = arith.constant 0 : i32
    %c0_i32_1 = arith.constant 0 : i32
    return %c0_i32, %c0_i32_0 : i32, i32
  }
  func.func @transform_4(%arg0: i32) -> (i32, i32) {
    %c0_i32 = arith.constant 0 : i32
    %c0_i32_0 = arith.constant 0 : i32
    %c0_i32_1 = arith.constant 0 : i32
    return %c0_i32, %c0_i32_0 : i32, i32
  }
  func.func @transform_5(%arg0: i32) -> (i32, i32) {
    %c0_i32 = arith.constant 0 : i32
    %c0_i32_0 = arith.constant 0 : i32
    %c0_i32_1 = arith.constant 0 : i32
    return %c0_i32, %c0_i32_0 : i32, i32
  }
  func.func @transform_6(%arg0: i32) -> (i32, i32) {
    %c0_i32 = arith.constant 0 : i32
    %c0_i32_0 = arith.constant 0 : i32
    %c0_i32_1 = arith.constant 0 : i32
    return %c0_i32, %c0_i32_0 : i32, i32
  }
  func.func @transform_7(%arg0: i32) -> (i32, i32) {
    %c0_i32 = arith.constant 0 : i32
    %c0_i32_0 = arith.constant 0 : i32
    return %arg0, %c0_i32 : i32, i32
  }
}

</mosaic_0001>

<llo_original>
// kernel: tpu_custom_call.1
$region0: #{tpu_custom_call.1}
  #allocation0 [shape = 'u32[]', space=smem, size = 0x4, offset = 0x4, fixed_abs, tag = 'smem constant byte address 0x4 - core index']
  #allocation1 [shape = 'u32[144,128]{1,0:T(1,128)}', space=vmem, size = 0x12000, scoped, tag = 'internal scratch']
  %s0 = inlined_call_operand.hbm [shape: f32[16,32], index: 0, kind: input, shape index: {}]
  %s1 = inlined_call_operand.hbm [shape: bf16[32,512], index: 1, kind: input, shape index: {}]
  %s2 = inlined_call_operand.hbm [shape: f32[1,512], index: 2, kind: input, shape index: {}]
  %s3 = inlined_call_operand.hbm [shape: bf16[512,256], index: 3, kind: input, shape index: {}]
  %s4 = inlined_call_operand.hbm [shape: f32[1,256], index: 4, kind: input, shape index: {}]
  %s5 = inlined_call_operand.hbm [shape: bf16[256,128], index: 5, kind: input, shape index: {}]
  %s6 = inlined_call_operand.hbm [shape: f32[1,128], index: 6, kind: input, shape index: {}]
  %s7 = inlined_call_operand.hbm [shape: f32[16,2], index: 7, kind: output, shape index: {}]
  %s8 = sld [smem:[#allocation0]]
  $region66: #{tpu_custom_call.1} parent=0
    _
  %s10 = ssub.s32 1, %s8
  %s11 = scalar_select 0, %s10, %s8
  $region1: #{tpu_custom_call.1} parent=0
    #allocation2 [shape = 'u8[8192]{0}', space=vmem, size = 0x2000, scoped, tag = 'input window, operand 0, single buffered']
    #allocation3 [shape = 's32[1]{0}', space=sflag, size = 0x4, scoped, tag = 'scoped memory for tpu_custom_call.1']
    #allocation4 [shape = 's32[1]{0}', space=sflag, size = 0x4, scoped, tag = 'scoped memory for tpu_custom_call.1']
    #allocation5 [shape = 'u8[32768]{0}', space=vmem, size = 0x8000, scoped, tag = 'input window, operand 1, single buffered']
    #allocation6 [shape = 's32[1]{0}', space=sflag, size = 0x4, scoped, tag = 'scoped memory for tpu_custom_call.1']
    #allocation7 [shape = 'u8[2048]{0}', space=vmem, size = 0x800, scoped, tag = 'input window, operand 2, single buffered']
    #allocation8 [shape = 'u8[262144]{0}', space=vmem, size = 0x40000, scoped, tag = 'input window, operand 3, single buffered']
    #allocation9 [shape = 's32[1]{0}', space=sflag, size = 0x4, scoped, tag = 'scoped memory for tpu_custom_call.1']
    #allocation10 [shape = 'u8[1024]{0}', space=vmem, size = 0x400, scoped, tag = 'input window, operand 4, single buffered']
    #allocation11 [shape = 'u8[65536]{0}', space=vmem, size = 0x10000, scoped, tag = 'input window, operand 5, single buffered']
    #allocation12 [shape = 's32[1]{0}', space=sflag, size = 0x4, scoped, tag = 'scoped memory for tpu_custom_call.1']
    #allocation13 [shape = 'u8[512]{0}', space=vmem, size = 0x400, scoped, tag = 'input window, operand 6, single buffered']
    #allocation14 [shape = 'u8[8192]{0}', space=vmem, size = 0x2000, scoped, tag = 'output window, operand 0, single buffered']
    %12 = vsyncpa [#allocation3], 0
    %13 = vsyncpa [#allocation6], 0
    %14 = vsyncpa [#allocation9], 0
    %15 = vsyncpa [#allocation12], 0
    %16 = vsyncpa [#allocation4], 0
    // Predicated region
    $region2: #{tpu_custom_call.1} parent=1 // pred_check
      _
    $region3: #{tpu_custom_call.1} parent=1 // pred_check_branch
      %18 = sbr.rel (0) target = $region5
    $region4: #{tpu_custom_call.1} parent=1 // pred_region
      %s20 = ssub.s32 256, 256
      %21 = vsyncadd [#allocation3], %s20
      %s22 = sshll.u32 [#allocation2], 4
      %s23 = int_to_ptr.vmem [resolvable:$true] %s22
      %28 = dma.hbm_to_vmem [thread:$0]  %s0, 256, %s23, [#allocation3], 128, 128, 8
    $region5: #{tpu_custom_call.1} parent=1 // pred_fallthru
      _
    // Predicated region
    $region6: #{tpu_custom_call.1} parent=1 // pred_check
      _
    $region7: #{tpu_custom_call.1} parent=1 // pred_check_branch
      %30 = sbr.rel (0) target = $region9
    $region8: #{tpu_custom_call.1} parent=1 // pred_region
      %s32 = ssub.s32 1024, 1024
      %33 = vsyncadd [#allocation6], %s32
      %s34 = sshll.u32 [#allocation5], 4
      %s35 = int_to_ptr.vmem [resolvable:$true] %s34
      %40 = dma.hbm_to_vmem [thread:$0]  %s1, 1024, %s35, [#allocation6], 256, 256, 16
    $region9: #{tpu_custom_call.1} parent=1 // pred_fallthru
      _
    // Predicated region
    $region10: #{tpu_custom_call.1} parent=1 // pred_check
      _
    $region11: #{tpu_custom_call.1} parent=1 // pred_check_branch
      %42 = sbr.rel (0) target = $region13
    $region12: #{tpu_custom_call.1} parent=1 // pred_region
      %s44 = ssub.s32 64, 64
      %45 = vsyncadd [#allocation6], %s44
      %s47 = sshll.u32 [#allocation7], 4
      %s48 = int_to_ptr.vmem [resolvable:$true] %s47
      %50 = dma.hbm_to_vmem [thread:$0]  %s2, 64, %s48, [#allocation6]
    $region13: #{tpu_custom_call.1} parent=1 // pred_fallthru
      _
    // Predicated region
    $region14: #{tpu_custom_call.1} parent=1 // pred_check
      _
    $region15: #{tpu_custom_call.1} parent=1 // pred_check_branch
      %52 = sbr.rel (0) target = $region17
    $region16: #{tpu_custom_call.1} parent=1 // pred_region
      %s54 = ssub.s32 8192, 8192
      %55 = vsyncadd [#allocation9], %s54
      %s56 = sshll.u32 [#allocation8], 4
      %s57 = int_to_ptr.vmem [resolvable:$true] %s56
      %62 = dma.hbm_to_vmem [thread:$0]  %s3, 8192, %s57, [#allocation9], 128, 128, 8
    $region17: #{tpu_custom_call.1} parent=1 // pred_fallthru
      _
    // Predicated region
    $region18: #{tpu_custom_call.1} parent=1 // pred_check
      _
    $region19: #{tpu_custom_call.1} parent=1 // pred_check_branch
      %64 = sbr.rel (0) target = $region21
    $region20: #{tpu_custom_call.1} parent=1 // pred_region
      %s66 = ssub.s32 32, 32
      %67 = vsyncadd [#allocation9], %s66
      %s69 = sshll.u32 [#allocation10], 4
      %s70 = int_to_ptr.vmem [resolvable:$true] %s69
      %72 = dma.hbm_to_vmem [thread:$0]  %s4, 32, %s70, [#allocation9]
    $region21: #{tpu_custom_call.1} parent=1 // pred_fallthru
      _
    // Predicated region
    $region22: #{tpu_custom_call.1} parent=1 // pred_check
      _
    $region23: #{tpu_custom_call.1} parent=1 // pred_check_branch
      %74 = sbr.rel (0) target = $region25
    $region24: #{tpu_custom_call.1} parent=1 // pred_region
      %s76 = ssub.s32 2048, 2048
      %77 = vsyncadd [#allocation12], %s76
      %s78 = sshll.u32 [#allocation11], 4
      %s79 = int_to_ptr.vmem [resolvable:$true] %s78
      %84 = dma.hbm_to_vmem [thread:$0]  %s5, 2048, %s79, [#allocation12], 64, 64, 4
    $region25: #{tpu_custom_call.1} parent=1 // pred_fallthru
      _
    // Predicated region
    $region26: #{tpu_custom_call.1} parent=1 // pred_check
      _
    $region27: #{tpu_custom_call.1} parent=1 // pred_check_branch
      %86 = sbr.rel (0) target = $region29
    $region28: #{tpu_custom_call.1} parent=1 // pred_region
      %s88 = ssub.s32 16, 16
      %89 = vsyncadd [#allocation12], %s88
      %s91 = sshll.u32 [#allocation13], 4
      %s92 = int_to_ptr.vmem [resolvable:$true] %s91
      %94 = dma.hbm_to_vmem [thread:$0]  %s6, 16, %s92, [#allocation12]
    $region29: #{tpu_custom_call.1} parent=1 // pred_fallthru
      _
    // Predicated region
    $region30: #{tpu_custom_call.1} parent=1 // pred_check
      _
    $region31: #{tpu_custom_call.1} parent=1 // pred_check_branch
      %96 = sbr.rel (0) target = $region33
    $region32: #{tpu_custom_call.1} parent=1 // pred_region
      %97 = dma.done [#allocation3], 256
    $region33: #{tpu_custom_call.1} parent=1 // pred_fallthru
      _
    // Predicated region
    $region34: #{tpu_custom_call.1} parent=1 // pred_check
      _
    $region35: #{tpu_custom_call.1} parent=1 // pred_check_branch
      %99 = sbr.rel (0) target = $region37
    $region36: #{tpu_custom_call.1} parent=1 // pred_region
      %100 = dma.done [#allocation6], 1024
    $region37: #{tpu_custom_call.1} parent=1 // pred_fallthru
      _
    // Predicated region
    $region38: #{tpu_custom_call.1} parent=1 // pred_check
      _
    $region39: #{tpu_custom_call.1} parent=1 // pred_check_branch
      %102 = sbr.rel (0) target = $region41
    $region40: #{tpu_custom_call.1} parent=1 // pred_region
      %103 = dma.done [#allocation6], 64
    $region41: #{tpu_custom_call.1} parent=1 // pred_fallthru
      _
    // Predicated region
    $region42: #{tpu_custom_call.1} parent=1 // pred_check
      _
    $region43: #{tpu_custom_call.1} parent=1 // pred_check_branch
      %105 = sbr.rel (0) target = $region45
    $region44: #{tpu_custom_call.1} parent=1 // pred_region
      %106 = dma.done [#allocation9], 8192
    $region45: #{tpu_custom_call.1} parent=1 // pred_fallthru
      _
    // Predicated region
    $region46: #{tpu_custom_call.1} parent=1 // pred_check
      _
    $region47: #{tpu_custom_call.1} parent=1 // pred_check_branch
      %108 = sbr.rel (0) target = $region49
    $region48: #{tpu_custom_call.1} parent=1 // pred_region
      %109 = dma.done [#allocation9], 32
    $region49: #{tpu_custom_call.1} parent=1 // pred_fallthru
      _
    // Predicated region
    $region50: #{tpu_custom_call.1} parent=1 // pred_check
      _
    $region51: #{tpu_custom_call.1} parent=1 // pred_check_branch
      %111 = sbr.rel (0) target = $region53
    $region52: #{tpu_custom_call.1} parent=1 // pred_region
      %112 = dma.done [#allocation12], 2048
    $region53: #{tpu_custom_call.1} parent=1 // pred_fallthru
      _
    // Predicated region
    $region54: #{tpu_custom_call.1} parent=1 // pred_check
      _
    $region55: #{tpu_custom_call.1} parent=1 // pred_check_branch
      %114 = sbr.rel (0) target = $region57
    $region56: #{tpu_custom_call.1} parent=1 // pred_region
      %115 = dma.done [#allocation12], 16
    $region57: #{tpu_custom_call.1} parent=1 // pred_fallthru
      _
    %v117 = vld [vmem:[#allocation2] sm:$0xff]
    %v118 = vld [vmem:[#allocation2 + $0x8] sm:$0xff]
    %v119 = vpack.c.bf16 %v118, %v117
    %v120 = vld [vmem:[#allocation5] sm:$0xff]
    %v121 = vld [vmem:[#allocation5 + $0x8] sm:$0xff]
    %v122 = vld [vmem:[#allocation5 + $0x10] sm:$0xff]
    %v123 = vld [vmem:[#allocation5 + $0x18] sm:$0xff]
    %v124 = vld [vmem:[#allocation5 + $0x20] sm:$0xff]
    %v125 = vld [vmem:[#allocation5 + $0x28] sm:$0xff]
    %v126 = vld [vmem:[#allocation5 + $0x30] sm:$0xff]
    %v127 = vld [vmem:[#allocation5 + $0x38] sm:$0xff]
    %v128 = vld [vmem:[#allocation7] sm:$0xf]
    %v130 = vlaneseq
    %v131 = vshrl.u32 %v130, 7
    %v132 = vsub.s32 0, %v131
    %v133 = vrot.slane %v128, %v132
    %v134 = vlaneseq
    %v135 = vshrl.u32 %v134, 7
    %v136 = vsub.s32 1, %v135
    %v137 = vrot.slane %v128, %v136
    %v138 = vlaneseq
    %v139 = vshrl.u32 %v138, 7
    %v140 = vsub.s32 2, %v139
    %v141 = vrot.slane %v128, %v140
    %v142 = vlaneseq
    %v143 = vshrl.u32 %v142, 7
    %v144 = vsub.s32 3, %v143
    %v145 = vrot.slane %v128, %v144
    %v158 = vunpack.c.l.b16 %v120
    %v159 = vunpack.c.h.b16 %v120
    %v160 = vunpack.c.l.b16 %v121
    %v161 = vunpack.c.h.b16 %v121
    %v162 = vunpack.c.l.b16 %v122
    %v163 = vunpack.c.h.b16 %v122
    %v164 = vunpack.c.l.b16 %v123
    %v165 = vunpack.c.h.b16 %v123
    %v166 = vunpack.c.l.b16 %v124
    %v167 = vunpack.c.h.b16 %v124
    %v168 = vunpack.c.l.b16 %v125
    %v169 = vunpack.c.h.b16 %v125
    %v170 = vunpack.c.l.b16 %v126
    %v171 = vunpack.c.h.b16 %v126
    %v172 = vunpack.c.l.b16 %v127
    %v173 = vunpack.c.h.b16 %v127
    %v174 = vpack.c.b16 %v162, %v158
    %v175 = vpack.c.b16 %v163, %v159
    %v176 = vpack.c.b16 %v164, %v160
    %v177 = vpack.c.b16 %v165, %v161
    %v178 = vpack.c.b16 %v170, %v166
    %v179 = vpack.c.b16 %v171, %v167
    %v180 = vpack.c.b16 %v172, %v168
    %v181 = vpack.c.b16 %v173, %v169
    %vm190 = vcmask 261120
    %v192 = vsel %vm190, %v119, 0
    %194 = vmatprep.subr.bf16.mxu0 %v175
    %195 = vmatpush1.bf16.msra.mxu0 %v174
    %196 = vmatprep.subr.bf16.mxu0 %v179
    %197 = vmatpush1.bf16.msra.mxu0 %v178
    %198 = vmatprep.subr.bf16.mxu0 0
    %199 = vmatpush1.bf16.msra.mxu0 0
    %200 = vmatprep.subr.bf16.mxu0 0
    %201 = vmatpush1.bf16.msra.mxu0 0
    %202 = vmatprep.subr.bf16.mxu0 0
    %203 = vmatpush1.bf16.msra.mxu0 0
    %204 = vmatprep.subr.bf16.mxu0 0
    %205 = vmatpush1.bf16.msra.mxu0 0
    %206 = vmatprep.subr.bf16.mxu0 0
    %207 = vmatpush1.bf16.msra.mxu0 0
    %208 = vmatprep.subr.bf16.mxu0 0
    %209 = vmatpush1.bf16.msra.mxu0 0
    %210 = vmatprep.subr.bf16.mxu0 0
    %211 = vmatpush1.bf16.msra.mxu0 0
    %212 = vmatprep.subr.bf16.mxu0 0
    %213 = vmatpush1.bf16.msra.mxu0 0
    %214 = vmatprep.subr.bf16.mxu0 0
    %215 = vmatpush1.bf16.msra.mxu0 0
    %216 = vmatprep.subr.bf16.mxu0 0
    %217 = vmatpush1.bf16.msra.mxu0 0
    %218 = vmatprep.subr.bf16.mxu0 0
    %219 = vmatpush1.bf16.msra.mxu0 0
    %220 = vmatprep.subr.bf16.mxu0 0
    %221 = vmatpush1.bf16.msra.mxu0 0
    %222 = vmatprep.subr.bf16.mxu0 0
    %223 = vmatpush1.bf16.msra.mxu0 0
    %224 = vmatprep.subr.bf16.mxu0 0
    %225 = vmatpush1.bf16.msra.mxu0 0
    %226 = vmatprep.mubr.bf16.mxu0 0
    %227 = vmatmul.mubr.bf16.gmra.mrb[0].mxu0 %v192
    %v228 = vpop.f32.mrb[0].mxu0
    %v229 = vadd.f32 %v133, %v228
    %v230 = vpop.f32.mrb[0].mxu0
    %v231 = vadd.f32 %v137, %v230
    %v232 = vpop.f32.mrb[0].mxu0
    %v233 = vadd.f32 %v133, %v232
    %v234 = vpop.f32.mrb[0].mxu0
    %v235 = vadd.f32 %v137, %v234
    %236 = vdwg.mxu0
    %237 = vmatprep.subr.bf16.mxu0 %v177
    %238 = vmatpush1.bf16.msra.mxu0 %v176
    %239 = vmatprep.subr.bf16.mxu0 %v181
    %240 = vmatpush1.bf16.msra.mxu0 %v180
    %241 = vmatprep.subr.bf16.mxu0 0
    %242 = vmatpush1.bf16.msra.mxu0 0
    %243 = vmatprep.subr.bf16.mxu0 0
    %244 = vmatpush1.bf16.msra.mxu0 0
    %245 = vmatprep.subr.bf16.mxu0 0
    %246 = vmatpush1.bf16.msra.mxu0 0
    %247 = vmatprep.subr.bf16.mxu0 0
    %248 = vmatpush1.bf16.msra.mxu0 0
    %249 = vmatprep.subr.bf16.mxu0 0
    %250 = vmatpush1.bf16.msra.mxu0 0
    %251 = vmatprep.subr.bf16.mxu0 0
    %252 = vmatpush1.bf16.msra.mxu0 0
    %253 = vmatprep.subr.bf16.mxu0 0
    %254 = vmatpush1.bf16.msra.mxu0 0
    %255 = vmatprep.subr.bf16.mxu0 0
    %256 = vmatpush1.bf16.msra.mxu0 0
    %257 = vmatprep.subr.bf16.mxu0 0
    %258 = vmatpush1.bf16.msra.mxu0 0
    %259 = vmatprep.subr.bf16.mxu0 0
    %260 = vmatpush1.bf16.msra.mxu0 0
    %261 = vmatprep.subr.bf16.mxu0 0
    %262 = vmatpush1.bf16.msra.mxu0 0
    %263 = vmatprep.subr.bf16.mxu0 0
    %264 = vmatpush1.bf16.msra.mxu0 0
    %265 = vmatprep.subr.bf16.mxu0 0
    %266 = vmatpush1.bf16.msra.mxu0 0
    %267 = vmatprep.subr.bf16.mxu0 0
    %268 = vmatpush1.bf16.msra.mxu0 0
    %269 = vmatprep.mubr.bf16.mxu0 0
    %270 = vmatmul.mubr.bf16.gmra.mrb[0].mxu0 %v192
    %v271 = vpop.f32.mrb[0].mxu0
    %v272 = vadd.f32 %v141, %v271
    %v273 = vpop.f32.mrb[0].mxu0
    %v274 = vadd.f32 %v145, %v273
    %v275 = vpop.f32.mrb[0].mxu0
    %v276 = vadd.f32 %v141, %v275
    %v277 = vpop.f32.mrb[0].mxu0
    %v278 = vadd.f32 %v145, %v277
    %279 = vdwg.mxu0
    %v280 = vmax.f32 %v229, 0.0
    %v281 = vmax.f32 %v231, 0.0
    %v282 = vmax.f32 %v272, 0.0
    %v283 = vmax.f32 %v274, 0.0
    %v284 = vmax.f32 %v233, 0.0
    %v285 = vmax.f32 %v235, 0.0
    %v286 = vmax.f32 %v276, 0.0
    %v287 = vmax.f32 %v278, 0.0
    %v288 = vpack.c.bf16 %v284, %v280
    %v289 = vpack.c.bf16 %v285, %v281
    %v290 = vpack.c.bf16 %v286, %v282
    %v291 = vpack.c.bf16 %v287, %v283
    %v292 = vld [vmem:[#allocation8] sm:$0xff]
    %v293 = vld [vmem:[#allocation8 + $0x8] sm:$0xff]
    %v294 = vld [vmem:[#allocation8 + $0x10] sm:$0xff]
    %v295 = vld [vmem:[#allocation8 + $0x18] sm:$0xff]
    %v296 = vld [vmem:[#allocation8 + $0x20] sm:$0xff]
    %v297 = vld [vmem:[#allocation8 + $0x28] sm:$0xff]
    %v298 = vld [vmem:[#allocation8 + $0x30] sm:$0xff]
    %v299 = vld [vmem:[#allocation8 + $0x38] sm:$0xff]
    %v300 = vld [vmem:[#allocation8 + $0x40] sm:$0xff]
    %v301 = vld [vmem:[#allocation8 + $0x48] sm:$0xff]
    %v302 = vld [vmem:[#allocation8 + $0x50] sm:$0xff]
    %v303 = vld [vmem:[#allocation8 + $0x58] sm:$0xff]
    %v304 = vld [vmem:[#allocation8 + $0x60] sm:$0xff]
    %v305 = vld [vmem:[#allocation8 + $0x68] sm:$0xff]
    %v306 = vld [vmem:[#allocation8 + $0x70] sm:$0xff]
    %v307 = vld [vmem:[#allocation8 + $0x78] sm:$0xff]
    %v308 = vld [vmem:[#allocation8 + $0x80] sm:$0xff]
    %v309 = vld [vmem:[#allocation8 + $0x88] sm:$0xff]
    %v310 = vld [vmem:[#allocation8 + $0x90] sm:$0xff]
    %v311 = vld [vmem:[#allocation8 + $0x98] sm:$0xff]
    %v312 = vld [vmem:[#allocation8 + $0xa0] sm:$0xff]
    %v313 = vld [vmem:[#allocation8 + $0xa8] sm:$0xff]
    %v314 = vld [vmem:[#allocation8 + $0xb0] sm:$0xff]
    %v315 = vld [vmem:[#allocation8 + $0xb8] sm:$0xff]
    %v316 = vld [vmem:[#allocation8 + $0xc0] sm:$0xff]
    %v317 = vld [vmem:[#allocation8 + $0xc8] sm:$0xff]
    %v318 = vld [vmem:[#allocation8 + $0xd0] sm:$0xff]
    %v319 = vld [vmem:[#allocation8 + $0xd8] sm:$0xff]
    %v320 = vld [vmem:[#allocation8 + $0xe0] sm:$0xff]
    %v321 = vld [vmem:[#allocation8 + $0xe8] sm:$0xff]
    %v322 = vld [vmem:[#allocation8 + $0xf0] sm:$0xff]
    %v323 = vld [vmem:[#allocation8 + $0xf8] sm:$0xff]
    %v324 = vld [vmem:[#allocation8 + $0x100] sm:$0xff]
    %v325 = vld [vmem:[#allocation8 + $0x108] sm:$0xff]
    %v326 = vld [vmem:[#allocation8 + $0x110] sm:$0xff]
    %v327 = vld [vmem:[#allocation8 + $0x118] sm:$0xff]
    %v328 = vld [vmem:[#allocation8 + $0x120] sm:$0xff]
    %v329 = vld [vmem:[#allocation8 + $0x128] sm:$0xff]
    %v330 = vld [vmem:[#allocation8 + $0x130] sm:$0xff]
    %v331 = vld [vmem:[#allocation8 + $0x138] sm:$0xff]
    %v332 = vld [vmem:[#allocation8 + $0x140] sm:$0xff]
    %v333 = vld [vmem:[#allocation8 + $0x148] sm:$0xff]
    %v334 = vld [vmem:[#allocation8 + $0x150] sm:$0xff]
    %v335 = vld [vmem:[#allocation8 + $0x158] sm:$0xff]
    %v336 = vld [vmem:[#allocation8 + $0x160] sm:$0xff]
    %v337 = vld [vmem:[#allocation8 + $0x168] sm:$0xff]
    %v338 = vld [vmem:[#allocation8 + $0x170] sm:$0xff]
    %v339 = vld [vmem:[#allocation8 + $0x178] sm:$0xff]
    %v340 = vld [vmem:[#allocation8 + $0x180] sm:$0xff]
    %v341 = vld [vmem:[#allocation8 + $0x188] sm:$0xff]
    %v342 = vld [vmem:[#allocation8 + $0x190] sm:$0xff]
    %v343 = vld [vmem:[#allocation8 + $0x198] sm:$0xff]
    %v344 = vld [vmem:[#allocation8 + $0x1a0] sm:$0xff]
    %v345 = vld [vmem:[#allocation8 + $0x1a8] sm:$0xff]
    %v346 = vld [vmem:[#allocation8 + $0x1b0] sm:$0xff]
    %v347 = vld [vmem:[#allocation8 + $0x1b8] sm:$0xff]
    %v348 = vld [vmem:[#allocation8 + $0x1c0] sm:$0xff]
    %v349 = vld [vmem:[#allocation8 + $0x1c8] sm:$0xff]
    %v350 = vld [vmem:[#allocation8 + $0x1d0] sm:$0xff]
    %v351 = vld [vmem:[#allocation8 + $0x1d8] sm:$0xff]
    %v352 = vld [vmem:[#allocation8 + $0x1e0] sm:$0xff]
    %v353 = vld [vmem:[#allocation8 + $0x1e8] sm:$0xff]
    %v354 = vld [vmem:[#allocation8 + $0x1f0] sm:$0xff]
    %v355 = vld [vmem:[#allocation8 + $0x1f8] sm:$0xff]
    %v356 = vld [vmem:[#allocation10] sm:$0x3]
    %v358 = vlaneseq
    %v359 = vshrl.u32 %v358, 7
    %v360 = vsub.s32 0, %v359
    %v361 = vrot.slane %v356, %v360
    %v362 = vlaneseq
    %v363 = vshrl.u32 %v362, 7
    %v364 = vsub.s32 1, %v363
    %v365 = vrot.slane %v356, %v364
    %v432 = vunpack.c.l.b16 %v292
    %v433 = vunpack.c.h.b16 %v292
    %v434 = vunpack.c.l.b16 %v293
    %v435 = vunpack.c.h.b16 %v293
    %v436 = vunpack.c.l.b16 %v294
    %v437 = vunpack.c.h.b16 %v294
    %v438 = vunpack.c.l.b16 %v295
    %v439 = vunpack.c.h.b16 %v295
    %v440 = vunpack.c.l.b16 %v296
    %v441 = vunpack.c.h.b16 %v296
    %v442 = vunpack.c.l.b16 %v297
    %v443 = vunpack.c.h.b16 %v297
    %v444 = vunpack.c.l.b16 %v298
    %v445 = vunpack.c.h.b16 %v298
    %v446 = vunpack.c.l.b16 %v299
    %v447 = vunpack.c.h.b16 %v299
    %v448 = vunpack.c.l.b16 %v300
    %v449 = vunpack.c.h.b16 %v300
    %v450 = vunpack.c.l.b16 %v301
    %v451 = vunpack.c.h.b16 %v301
    %v452 = vunpack.c.l.b16 %v302
    %v453 = vunpack.c.h.b16 %v302
    %v454 = vunpack.c.l.b16 %v303
    %v455 = vunpack.c.h.b16 %v303
    %v456 = vunpack.c.l.b16 %v304
    %v457 = vunpack.c.h.b16 %v304
    %v458 = vunpack.c.l.b16 %v305
    %v459 = vunpack.c.h.b16 %v305
    %v460 = vunpack.c.l.b16 %v306
    %v461 = vunpack.c.h.b16 %v306
    %v462 = vunpack.c.l.b16 %v307
    %v463 = vunpack.c.h.b16 %v307
    %v464 = vunpack.c.l.b16 %v308
    %v465 = vunpack.c.h.b16 %v308
    %v466 = vunpack.c.l.b16 %v309
    %v467 = vunpack.c.h.b16 %v309
    %v468 = vunpack.c.l.b16 %v310
    %v469 = vunpack.c.h.b16 %v310
    %v470 = vunpack.c.l.b16 %v311
    %v471 = vunpack.c.h.b16 %v311
    %v472 = vunpack.c.l.b16 %v312
    %v473 = vunpack.c.h.b16 %v312
    %v474 = vunpack.c.l.b16 %v313
    %v475 = vunpack.c.h.b16 %v313
    %v476 = vunpack.c.l.b16 %v314
    %v477 = vunpack.c.h.b16 %v314
    %v478 = vunpack.c.l.b16 %v315
    %v479 = vunpack.c.h.b16 %v315
    %v480 = vunpack.c.l.b16 %v316
    %v481 = vunpack.c.h.b16 %v316
    %v482 = vunpack.c.l.b16 %v317
    %v483 = vunpack.c.h.b16 %v317
    %v484 = vunpack.c.l.b16 %v318
    %v485 = vunpack.c.h.b16 %v318
    %v486 = vunpack.c.l.b16 %v319
    %v487 = vunpack.c.h.b16 %v319
    %v488 = vunpack.c.l.b16 %v320
    %v489 = vunpack.c.h.b16 %v320
    %v490 = vunpack.c.l.b16 %v321
    %v491 = vunpack.c.h.b16 %v321
    %v492 = vunpack.c.l.b16 %v322
    %v493 = vunpack.c.h.b16 %v322
    %v494 = vunpack.c.l.b16 %v323
    %v495 = vunpack.c.h.b16 %v323
    %v496 = vunpack.c.l.b16 %v324
    %v497 = vunpack.c.h.b16 %v324
    %v498 = vunpack.c.l.b16 %v325
    %v499 = vunpack.c.h.b16 %v325
    %v500 = vunpack.c.l.b16 %v326
    %v501 = vunpack.c.h.b16 %v326
    %v502 = vunpack.c.l.b16 %v327
    %v503 = vunpack.c.h.b16 %v327
    %v504 = vunpack.c.l.b16 %v328
    %v505 = vunpack.c.h.b16 %v328
    %v506 = vunpack.c.l.b16 %v329
    %v507 = vunpack.c.h.b16 %v329
    %v508 = vunpack.c.l.b16 %v330
    %v509 = vunpack.c.h.b16 %v330
    %v510 = vunpack.c.l.b16 %v331
    %v511 = vunpack.c.h.b16 %v331
    %v512 = vunpack.c.l.b16 %v332
    %v513 = vunpack.c.h.b16 %v332
    %v514 = vunpack.c.l.b16 %v333
    %v515 = vunpack.c.h.b16 %v333
    %v516 = vunpack.c.l.b16 %v334
    %v517 = vunpack.c.h.b16 %v334
    %v518 = vunpack.c.l.b16 %v335
    %v519 = vunpack.c.h.b16 %v335
    %v520 = vunpack.c.l.b16 %v336
    %v521 = vunpack.c.h.b16 %v336
    %v522 = vunpack.c.l.b16 %v337
    %v523 = vunpack.c.h.b16 %v337
    %v524 = vunpack.c.l.b16 %v338
    %v525 = vunpack.c.h.b16 %v338
    %v526 = vunpack.c.l.b16 %v339
    %v527 = vunpack.c.h.b16 %v339
    %v528 = vunpack.c.l.b16 %v340
    %v529 = vunpack.c.h.b16 %v340
    %v530 = vunpack.c.l.b16 %v341
    %v531 = vunpack.c.h.b16 %v341
    %v532 = vunpack.c.l.b16 %v342
    %v533 = vunpack.c.h.b16 %v342
    %v534 = vunpack.c.l.b16 %v343
    %v535 = vunpack.c.h.b16 %v343
    %v536 = vunpack.c.l.b16 %v344
    %v537 = vunpack.c.h.b16 %v344
    %v538 = vunpack.c.l.b16 %v345
    %v539 = vunpack.c.h.b16 %v345
    %v540 = vunpack.c.l.b16 %v346
    %v541 = vunpack.c.h.b16 %v346
    %v542 = vunpack.c.l.b16 %v347
    %v543 = vunpack.c.h.b16 %v347
    %v544 = vunpack.c.l.b16 %v348
    %v545 = vunpack.c.h.b16 %v348
    %v546 = vunpack.c.l.b16 %v349
    %v547 = vunpack.c.h.b16 %v349
    %v548 = vunpack.c.l.b16 %v350
    %v549 = vunpack.c.h.b16 %v350
    %v550 = vunpack.c.l.b16 %v351
    %v551 = vunpack.c.h.b16 %v351
    %v552 = vunpack.c.l.b16 %v352
    %v553 = vunpack.c.h.b16 %v352
    %v554 = vunpack.c.l.b16 %v353
    %v555 = vunpack.c.h.b16 %v353
    %v556 = vunpack.c.l.b16 %v354
    %v557 = vunpack.c.h.b16 %v354
    %v558 = vunpack.c.l.b16 %v355
    %v559 = vunpack.c.h.b16 %v355
    %v560 = vpack.c.b16 %v434, %v432
    %v561 = vpack.c.b16 %v435, %v433
    %v562 = vpack.c.b16 %v438, %v436
    %v563 = vpack.c.b16 %v439, %v437
    %v564 = vpack.c.b16 %v442, %v440
    %v565 = vpack.c.b16 %v443, %v441
    %v566 = vpack.c.b16 %v446, %v444
    %v567 = vpack.c.b16 %v447, %v445
    %v568 = vpack.c.b16 %v450, %v448
    %v569 = vpack.c.b16 %v451, %v449
    %v570 = vpack.c.b16 %v454, %v452
    %v571 = vpack.c.b16 %v455, %v453
    %v572 = vpack.c.b16 %v458, %v456
    %v573 = vpack.c.b16 %v459, %v457
    %v574 = vpack.c.b16 %v462, %v460
    %v575 = vpack.c.b16 %v463, %v461
    %v576 = vpack.c.b16 %v466, %v464
    %v577 = vpack.c.b16 %v467, %v465
    %v578 = vpack.c.b16 %v470, %v468
    %v579 = vpack.c.b16 %v471, %v469
    %v580 = vpack.c.b16 %v474, %v472
    %v581 = vpack.c.b16 %v475, %v473
    %v582 = vpack.c.b16 %v478, %v476
    %v583 = vpack.c.b16 %v479, %v477
    %v584 = vpack.c.b16 %v482, %v480
    %v585 = vpack.c.b16 %v483, %v481
    %v586 = vpack.c.b16 %v486, %v484
    %v587 = vpack.c.b16 %v487, %v485
    %v588 = vpack.c.b16 %v490, %v488
    %v589 = vpack.c.b16 %v491, %v489
    %v590 = vpack.c.b16 %v494, %v492
    %v591 = vpack.c.b16 %v495, %v493
    %v592 = vpack.c.b16 %v498, %v496
    %v593 = vpack.c.b16 %v499, %v497
    %v594 = vpack.c.b16 %v502, %v500
    %v595 = vpack.c.b16 %v503, %v501
    %v596 = vpack.c.b16 %v506, %v504
    %v597 = vpack.c.b16 %v507, %v505
    %v598 = vpack.c.b16 %v510, %v508
    %v599 = vpack.c.b16 %v511, %v509
    %v600 = vpack.c.b16 %v514, %v512
    %v601 = vpack.c.b16 %v515, %v513
    %v602 = vpack.c.b16 %v518, %v516
    %v603 = vpack.c.b16 %v519, %v517
    %v604 = vpack.c.b16 %v522, %v520
    %v605 = vpack.c.b16 %v523, %v521
    %v606 = vpack.c.b16 %v526, %v524
    %v607 = vpack.c.b16 %v527, %v525
    %v608 = vpack.c.b16 %v530, %v528
    %v609 = vpack.c.b16 %v531, %v529
    %v610 = vpack.c.b16 %v534, %v532
    %v611 = vpack.c.b16 %v535, %v533
    %v612 = vpack.c.b16 %v538, %v536
    %v613 = vpack.c.b16 %v539, %v537
    %v614 = vpack.c.b16 %v542, %v540
    %v615 = vpack.c.b16 %v543, %v541
    %v616 = vpack.c.b16 %v546, %v544
    %v617 = vpack.c.b16 %v547, %v545
    %v618 = vpack.c.b16 %v550, %v548
    %v619 = vpack.c.b16 %v551, %v549
    %v620 = vpack.c.b16 %v554, %v552
    %v621 = vpack.c.b16 %v555, %v553
    %v622 = vpack.c.b16 %v558, %v556
    %v623 = vpack.c.b16 %v559, %v557
    %688 = vmatprep.subr.bf16.mxu0 %v561
    %689 = vmatpush1.bf16.msra.mxu0 %v560
    %690 = vmatprep.subr.bf16.mxu0 %v563
    %691 = vmatpush1.bf16.msra.mxu0 %v562
    %692 = vmatprep.subr.bf16.mxu0 %v565
    %693 = vmatpush1.bf16.msra.mxu0 %v564
    %694 = vmatprep.subr.bf16.mxu0 %v567
    %695 = vmatpush1.bf16.msra.mxu0 %v566
    %696 = vmatprep.subr.bf16.mxu0 %v569
    %697 = vmatpush1.bf16.msra.mxu0 %v568
    %698 = vmatprep.subr.bf16.mxu0 %v571
    %699 = vmatpush1.bf16.msra.mxu0 %v570
    %700 = vmatprep.subr.bf16.mxu0 %v573
    %701 = vmatpush1.bf16.msra.mxu0 %v572
    %702 = vmatprep.subr.bf16.mxu0 %v575
    %703 = vmatpush1.bf16.msra.mxu0 %v574
    %704 = vmatprep.subr.bf16.mxu0 %v577
    %705 = vmatpush1.bf16.msra.mxu0 %v576
    %706 = vmatprep.subr.bf16.mxu0 %v579
    %707 = vmatpush1.bf16.msra.mxu0 %v578
    %708 = vmatprep.subr.bf16.mxu0 %v581
    %709 = vmatpush1.bf16.msra.mxu0 %v580
    %710 = vmatprep.subr.bf16.mxu0 %v583
    %711 = vmatpush1.bf16.msra.mxu0 %v582
    %712 = vmatprep.subr.bf16.mxu0 %v585
    %713 = vmatpush1.bf16.msra.mxu0 %v584
    %714 = vmatprep.subr.bf16.mxu0 %v587
    %715 = vmatpush1.bf16.msra.mxu0 %v586
    %716 = vmatprep.subr.bf16.mxu0 %v589
    %717 = vmatpush1.bf16.msra.mxu0 %v588
    %718 = vmatprep.subr.bf16.mxu0 %v591
    %719 = vmatpush1.bf16.msra.mxu0 %v590
    %720 = vmatprep.mubr.bf16.mxu0 %v289
    %721 = vmatmul.mubr.bf16.gmra.mrb[0].mxu0 %v288
    %v722 = vpop.f32.mrb[0].mxu0
    %v723 = vadd.f32 %v361, %v722
    %v724 = vpop.f32.mrb[0].mxu0
    %v725 = vadd.f32 %v365, %v724
    %v726 = vpop.f32.mrb[0].mxu0
    %v727 = vadd.f32 %v361, %v726
    %v728 = vpop.f32.mrb[0].mxu0
    %v729 = vadd.f32 %v365, %v728
    %730 = vdwg.mxu0
    %731 = vmatprep.subr.bf16.mxu0 %v593
    %732 = vmatpush1.bf16.msra.mxu0 %v592
    %733 = vmatprep.subr.bf16.mxu0 %v595
    %734 = vmatpush1.bf16.msra.mxu0 %v594
    %735 = vmatprep.subr.bf16.mxu0 %v597
    %736 = vmatpush1.bf16.msra.mxu0 %v596
    %737 = vmatprep.subr.bf16.mxu0 %v599
    %738 = vmatpush1.bf16.msra.mxu0 %v598
    %739 = vmatprep.subr.bf16.mxu0 %v601
    %740 = vmatpush1.bf16.msra.mxu0 %v600
    %741 = vmatprep.subr.bf16.mxu0 %v603
    %742 = vmatpush1.bf16.msra.mxu0 %v602
    %743 = vmatprep.subr.bf16.mxu0 %v605
    %744 = vmatpush1.bf16.msra.mxu0 %v604
    %745 = vmatprep.subr.bf16.mxu0 %v607
    %746 = vmatpush1.bf16.msra.mxu0 %v606
    %747 = vmatprep.subr.bf16.mxu0 %v609
    %748 = vmatpush1.bf16.msra.mxu0 %v608
    %749 = vmatprep.subr.bf16.mxu0 %v611
    %750 = vmatpush1.bf16.msra.mxu0 %v610
    %751 = vmatprep.subr.bf16.mxu0 %v613
    %752 = vmatpush1.bf16.msra.mxu0 %v612
    %753 = vmatprep.subr.bf16.mxu0 %v615
    %754 = vmatpush1.bf16.msra.mxu0 %v614
    %755 = vmatprep.subr.bf16.mxu0 %v617
    %756 = vmatpush1.bf16.msra.mxu0 %v616
    %757 = vmatprep.subr.bf16.mxu0 %v619
    %758 = vmatpush1.bf16.msra.mxu0 %v618
    %759 = vmatprep.subr.bf16.mxu0 %v621
    %760 = vmatpush1.bf16.msra.mxu0 %v620
    %761 = vmatprep.subr.bf16.mxu0 %v623
    %762 = vmatpush1.bf16.msra.mxu0 %v622
    %763 = vmatprep.mubr.bf16.mxu0 %v291
    %764 = vmatmul.mubr.bf16.gmra.mrb[0].mxu0 %v290
    %v765 = vpop.f32.mrb[0].mxu0
    %v766 = vadd.f32 %v723, %v765
    %v767 = vpop.f32.mrb[0].mxu0
    %v768 = vadd.f32 %v725, %v767
    %v769 = vpop.f32.mrb[0].mxu0
    %v770 = vadd.f32 %v727, %v769
    %v771 = vpop.f32.mrb[0].mxu0
    %v772 = vadd.f32 %v729, %v771
    %773 = vdwg.mxu0
    %v774 = vmax.f32 %v766, 0.0
    %v775 = vmax.f32 %v768, 0.0
    %v776 = vmax.f32 %v770, 0.0
    %v777 = vmax.f32 %v772, 0.0
    %v778 = vpack.c.bf16 %v776, %v774
    %v779 = vpack.c.bf16 %v777, %v775
    %v780 = vld [vmem:[#allocation11] sm:$0xf]
    %v781 = vld [vmem:[#allocation11 + $0x4] sm:$0xf]
    %v782 = vld [vmem:[#allocation11 + $0x8] sm:$0xf]
    %v783 = vld [vmem:[#allocation11 + $0xc] sm:$0xf]
    %v784 = vld [vmem:[#allocation11 + $0x10] sm:$0xf]
    %v785 = vld [vmem:[#allocation11 + $0x14] sm:$0xf]
    %v786 = vld [vmem:[#allocation11 + $0x18] sm:$0xf]
    %v787 = vld [vmem:[#allocation11 + $0x1c] sm:$0xf]
    %v788 = vld [vmem:[#allocation11 + $0x20] sm:$0xf]
    %v789 = vld [vmem:[#allocation11 + $0x24] sm:$0xf]
    %v790 = vld [vmem:[#allocation11 + $0x28] sm:$0xf]
    %v791 = vld [vmem:[#allocation11 + $0x2c] sm:$0xf]
    %v792 = vld [vmem:[#allocation11 + $0x30] sm:$0xf]
    %v793 = vld [vmem:[#allocation11 + $0x34] sm:$0xf]
    %v794 = vld [vmem:[#allocation11 + $0x38] sm:$0xf]
    %v795 = vld [vmem:[#allocation11 + $0x3c] sm:$0xf]
    %v796 = vld [vmem:[#allocation11 + $0x40] sm:$0xf]
    %v797 = vld [vmem:[#allocation11 + $0x44] sm:$0xf]
    %v798 = vld [vmem:[#allocation11 + $0x48] sm:$0xf]
    %v799 = vld [vmem:[#allocation11 + $0x4c] sm:$0xf]
    %v800 = vld [vmem:[#allocation11 + $0x50] sm:$0xf]
    %v801 = vld [vmem:[#allocation11 + $0x54] sm:$0xf]
    %v802 = vld [vmem:[#allocation11 + $0x58] sm:$0xf]
    %v803 = vld [vmem:[#allocation11 + $0x5c] sm:$0xf]
    %v804 = vld [vmem:[#allocation11 + $0x60] sm:$0xf]
    %v805 = vld [vmem:[#allocation11 + $0x64] sm:$0xf]
    %v806 = vld [vmem:[#allocation11 + $0x68] sm:$0xf]
    %v807 = vld [vmem:[#allocation11 + $0x6c] sm:$0xf]
    %v808 = vld [vmem:[#allocation11 + $0x70] sm:$0xf]
    %v809 = vld [vmem:[#allocation11 + $0x74] sm:$0xf]
    %v810 = vld [vmem:[#allocation11 + $0x78] sm:$0xf]
    %v811 = vld [vmem:[#allocation11 + $0x7c] sm:$0xf]
    %v812 = vld [vmem:[#allocation13] sm:$0x1]
    %v814 = vlaneseq
    %v815 = vshrl.u32 %v814, 7
    %v816 = vsub.s32 0, %v815
    %v817 = vrot.slane %v812, %v816
    %v851 = vunpack.c.l.b16 %v780
    %v852 = vunpack.c.l.b16 %v781
    %v853 = vunpack.c.l.b16 %v782
    %v854 = vunpack.c.l.b16 %v783
    %v855 = vunpack.c.l.b16 %v784
    %v856 = vunpack.c.l.b16 %v785
    %v857 = vunpack.c.l.b16 %v786
    %v858 = vunpack.c.l.b16 %v787
    %v859 = vunpack.c.l.b16 %v788
    %v860 = vunpack.c.l.b16 %v789
    %v861 = vunpack.c.l.b16 %v790
    %v862 = vunpack.c.l.b16 %v791
    %v863 = vunpack.c.l.b16 %v792
    %v864 = vunpack.c.l.b16 %v793
    %v865 = vunpack.c.l.b16 %v794
    %v866 = vunpack.c.l.b16 %v795
    %v867 = vunpack.c.l.b16 %v796
    %v868 = vunpack.c.l.b16 %v797
    %v869 = vunpack.c.l.b16 %v798
    %v870 = vunpack.c.l.b16 %v799
    %v871 = vunpack.c.l.b16 %v800
    %v872 = vunpack.c.l.b16 %v801
    %v873 = vunpack.c.l.b16 %v802
    %v874 = vunpack.c.l.b16 %v803
    %v875 = vunpack.c.l.b16 %v804
    %v876 = vunpack.c.l.b16 %v805
    %v877 = vunpack.c.l.b16 %v806
    %v878 = vunpack.c.l.b16 %v807
    %v879 = vunpack.c.l.b16 %v808
    %v880 = vunpack.c.l.b16 %v809
    %v881 = vunpack.c.l.b16 %v810
    %v882 = vunpack.c.l.b16 %v811
    %v883 = vpack.c.b16 %v852, %v851
    %v884 = vpack.c.b16 %v854, %v853
    %v885 = vpack.c.b16 %v856, %v855
    %v886 = vpack.c.b16 %v858, %v857
    %v887 = vpack.c.b16 %v860, %v859
    %v888 = vpack.c.b16 %v862, %v861
    %v889 = vpack.c.b16 %v864, %v863
    %v890 = vpack.c.b16 %v866, %v865
    %v891 = vpack.c.b16 %v868, %v867
    %v892 = vpack.c.b16 %v870, %v869
    %v893 = vpack.c.b16 %v872, %v871
    %v894 = vpack.c.b16 %v874, %v873
    %v895 = vpack.c.b16 %v876, %v875
    %v896 = vpack.c.b16 %v878, %v877
    %v897 = vpack.c.b16 %v880, %v879
    %v898 = vpack.c.b16 %v882, %v881
    %915 = vmatprep.subr.bf16.mxu0 0
    %916 = vmatpush1.bf16.msra.mxu0 %v883
    %917 = vmatprep.subr.bf16.mxu0 0
    %918 = vmatpush1.bf16.msra.mxu0 %v884
    %919 = vmatprep.subr.bf16.mxu0 0
    %920 = vmatpush1.bf16.msra.mxu0 %v885
    %921 = vmatprep.subr.bf16.mxu0 0
    %922 = vmatpush1.bf16.msra.mxu0 %v886
    %923 = vmatprep.subr.bf16.mxu0 0
    %924 = vmatpush1.bf16.msra.mxu0 %v887
    %925 = vmatprep.subr.bf16.mxu0 0
    %926 = vmatpush1.bf16.msra.mxu0 %v888
    %927 = vmatprep.subr.bf16.mxu0 0
    %928 = vmatpush1.bf16.msra.mxu0 %v889
    %929 = vmatprep.subr.bf16.mxu0 0
    %930 = vmatpush1.bf16.msra.mxu0 %v890
    %931 = vmatprep.subr.bf16.mxu0 0
    %932 = vmatpush1.bf16.msra.mxu0 %v891
    %933 = vmatprep.subr.bf16.mxu0 0
    %934 = vmatpush1.bf16.msra.mxu0 %v892
    %935 = vmatprep.subr.bf16.mxu0 0
    %936 = vmatpush1.bf16.msra.mxu0 %v893
    %937 = vmatprep.subr.bf16.mxu0 0
    %938 = vmatpush1.bf16.msra.mxu0 %v894
    %939 = vmatprep.subr.bf16.mxu0 0
    %940 = vmatpush1.bf16.msra.mxu0 %v895
    %941 = vmatprep.subr.bf16.mxu0 0
    %942 = vmatpush1.bf16.msra.mxu0 %v896
    %943 = vmatprep.subr.bf16.mxu0 0
    %944 = vmatpush1.bf16.msra.mxu0 %v897
    %945 = vmatprep.subr.bf16.mxu0 0
    %946 = vmatpush1.bf16.msra.mxu0 %v898
    %947 = vmatprep.mubr.bf16.mxu0 %v779
    %948 = vmatmul.mubr.bf16.gmra.mrb[0].mxu0 %v778
    %v949 = vpop.f32.mrb[0].mxu0
    %v950 = vadd.f32 %v817, %v949
    %v951 = vpop.f32.mrb[0].mxu0
    %v952 = vpop.f32.mrb[0].mxu0
    %v953 = vadd.f32 %v817, %v952
    %v954 = vpop.f32.mrb[0].mxu0
    %955 = vdwg.mxu0
    %v956 = vxor.u32 %v950, 2147483648
    %v957 = vxor.u32 %v953, 2147483648
    %v958 = vmul.f32 %v956, 1.442695
    %v959 = vpow.pop %v958
    %v960 = vmul.f32 %v957, 1.442695
    %v961 = vpow.pop %v960
    %v962 = vadd.f32 %v959, 1.0
    %v963 = vadd.f32 %v961, 1.0
    %v964 = vrcp.pop %v962
    %v965 = vmul.f32 1.0, %v964
    %v966 = vrcp.pop %v963
    %v967 = vmul.f32 1.0, %v966
    %vm968 = vcmask 15360
    %969 = vst.msk [vmem:[#allocation14] sm:$0xff] %vm968, %v965
    %970 = vst.msk [vmem:[#allocation14 + $0x8] sm:$0xff] %vm968, %v967
    // Predicated region
    $region58: #{tpu_custom_call.1} parent=1 // pred_check
      _
    $region59: #{tpu_custom_call.1} parent=1 // pred_check_branch
      %972 = sbr.rel (0) target = $region61
    $region60: #{tpu_custom_call.1} parent=1 // pred_region
      %s974 = ssub.s32 256, 256
      %975 = vsyncadd [#allocation4], %s974
      %s976 = sshll.u32 [#allocation14], 4
      %s977 = int_to_ptr.vmem [resolvable:$true] %s976
      %982 = dma.vmem_to_hbm [thread:$0]  %s977, 256, %s7, [#allocation4], 128, 128, 8
    $region61: #{tpu_custom_call.1} parent=1 // pred_fallthru
      _
    // Predicated region
    $region62: #{tpu_custom_call.1} parent=1 // pred_check
      _
    $region63: #{tpu_custom_call.1} parent=1 // pred_check_branch
      %984 = sbr.rel (0) target = $region65
    $region64: #{tpu_custom_call.1} parent=1 // pred_region
      %985 = dma.done [#allocation4], 256
    $region65: #{tpu_custom_call.1} parent=1 // pred_fallthru
      _
    %986 = vsyncpa [#allocation3], 1
    %987 = vsyncpa [#allocation6], 1
    %988 = vsyncpa [#allocation9], 1
    %989 = vsyncpa [#allocation12], 1
    %990 = vsyncpa [#allocation4], 1

</llo_original>
